<compile_context>
chip_gen: v6e
topology: v6e:2x2x1
jax: 0.10.0
libtpu: 0.0.40
codegen_flags: <defaults>
</compile_context>

<pallas_src>
import jax
import jax.numpy as jnp
from jax.experimental import pallas as pl
from jax.experimental.pallas import tpu as pltpu


def _locked_dropout_kernel(mask_ref, x_ref, o_ref):
    # mask_ref: (1, tile_w) broadcast over the (tile_t, tile_w) x tile.
    o_ref[...] = x_ref[...] * mask_ref[...]


def _round_up(n, m):
    return ((n + m - 1) // m) * m


# ~2 MiB per streamed x tile: large enough to amortize the ~0.35 us per grid
# step, small enough that 2x(in)+2x(out) double buffering stays well under
# every generation's scoped-VMEM budget.
_TARGET_TILE_BYTES = 2 * 1024 * 1024


def locked_dropout(x, seed, dropout=0.5, training=True):
    """JAX wrapper reproducing LockedDropout.forward semantics."""
    if (not training) or dropout == 0.0:
        return x
    # NOTE: dropout == 1.0 yields keep == 0 and a 0/0 = NaN mask, matching the
    # PyTorch reference's failure mode (no silent behavior change here).

    T, B, H = x.shape
    keep = 1.0 - float(dropout)

    # Sample the locked (1, B, H) mask once; inverted-dropout scaling baked in.
    key = jax.random.PRNGKey(seed)
    bern = jax.random.bernoulli(key, p=keep, shape=(1, B, H))
    mask = bern.astype(x.dtype) / jnp.asarray(keep, dtype=x.dtype)

    # Lane-dense 2D layout, no padding / slicing (pure views).
    W = B * H
    x2 = x.reshape(T, W)
    m2 = mask.reshape(1, W)

    itemsize = jnp.dtype(x.dtype).itemsize
    sub_mult = max(8, 32 // itemsize)      # sublane packing: 8 f32, 16 bf16, 32 int8
    row_bytes = W * itemsize

    if row_bytes * sub_mult > _TARGET_TILE_BYTES:
        # Very wide rows: even a minimum-height tile over full W blows the
        # budget -> tile the lane (W) axis too instead of shrinking tile_t to
        # the sublane floor.  Also gives v7x more parallel grid points.
        tile_t = T if T <= 4 * sub_mult else 4 * sub_mult
        lane_bytes = max(_TARGET_TILE_BYTES // max(tile_t, 1), 128 * itemsize)
        tile_w = max(128, (lane_bytes // (128 * itemsize)) * 128)
        if tile_w >= W:
            tile_w = W                     # full-dim block is always legal
    else:
        tile_w = W                         # full-dim lane block (legal even if W % 128 != 0)
        budget_rows = _TARGET_TILE_BYTES // max(row_bytes, 1)
        if budget_rows >= T or T <= sub_mult:
            tile_t = T                     # whole T fits the budget
        else:
            tile_t = max(sub_mult, (budget_rows // sub_mult) * sub_mult)

    n_t = pl.cdiv(T, tile_t)
    n_w = pl.cdiv(W, tile_w)

    # v7x has 2 TensorCores: make sure the "parallel" grid has >= 2 steps when
    # T allows it (v5e/v6e are unaffected; one extra grid step is negligible).
    if n_t * n_w < 2 and T > sub_mult:
        tile_t = _round_up(pl.cdiv(T, 2), sub_mult)
        n_t = pl.cdiv(T, tile_t)

    # Double-buffered x-in + out tiles, double-buffered mask, plus slack.
    tile_bytes = tile_t * tile_w * itemsize
    vmem_bytes = 4 * tile_bytes + 2 * tile_w * itemsize + (1 << 20)
    vmem_limit = int(min(max(vmem_bytes, 16 << 20), 48 << 20))

    out2 = pl.pallas_call(
        _locked_dropout_kernel,
        out_shape=jax.ShapeDtypeStruct((T, W), x.dtype),
        grid=(n_t, n_w),
        in_specs=[
            # Mask: one tiny row block per lane chunk, revisited -> VMEM-resident.
            pl.BlockSpec((1, tile_w), lambda i, j: (0, j)),
            # x: streamed tiles over (T, W).
            pl.BlockSpec((tile_t, tile_w), lambda i, j: (i, j)),
        ],
        out_specs=pl.BlockSpec((tile_t, tile_w), lambda i, j: (i, j)),
        compiler_params=pltpu.CompilerParams(
            dimension_semantics=("parallel", "parallel"),
            vmem_limit_bytes=vmem_limit,
        ),
        cost_estimate=pl.CostEstimate(
            flops=T * W,
            transcendentals=0,
            bytes_accessed=(2 * T * W + W) * itemsize,
        ),
    )(m2, x2)

    return out2.reshape(T, B, H)


if __name__ == "__main__":
    # LockedDropout has no parameters; build a deterministic rank-3 input.
    T, B, H = 8, 4, 32
    key = jax.random.PRNGKey(0)
    x = jax.random.normal(key, (T, B, H), dtype=jnp.float32)

    out = locked_dropout(x, seed=1234, dropout=0.5, training=True)
    out = jax.block_until_ready(out)

    # Sanity checks:
    #  - entries are either 0 or x / keep
    #  - mask is identical ("locked") across the time axis
    keep = 0.5
    ratio = jnp.where(x != 0, out / x, 0.0)
    implied_mask = jnp.round(ratio * keep)  # ~0 or ~1
    assert bool(jnp.all((implied_mask == 0) | (implied_mask == 1)))
    assert bool(jnp.all(implied_mask == implied_mask[0:1]))

    # Eval / dropout=0 path returns x unchanged.
    out_eval = jax.block_until_ready(
        locked_dropout(x, seed=1234, dropout=0.5, training=False))
    assert bool(jnp.all(out_eval == x))
    out_p0 = jax.block_until_ready(
        locked_dropout(x, seed=1234, dropout=0.0, training=True))
    assert bool(jnp.all(out_p0 == x))

    print("KERNEL_OK")
</pallas_src>

<mosaic_0001>
module attributes {stable_mosaic.version = 11 : i64} {
  func.func @_locked_dropout_kernel(%arg0: i32, %arg1: i32, %arg2: memref<1x128xf32, #tpu.memory_space<vmem>>, %arg3: memref<8x128xf32, #tpu.memory_space<vmem>>, %arg4: memref<8x128xf32, #tpu.memory_space<vmem>>) attributes {dimension_semantics = [#tpu.dimension_semantics<parallel>, #tpu.dimension_semantics<parallel>], iteration_bounds = array<i64: 1, 1>, scalar_prefetch = 0 : i64, scratch_operands = 0 : i64, tpu.core_type = #tpu.core_type<tc>, window_params = [{transform_indices = @transform_0, window_bounds = array<i64: 1, 128>}, {transform_indices = @transform_1, window_bounds = array<i64: 8, 128>}, {transform_indices = @transform_2, window_bounds = array<i64: 8, 128>}]} {
    %c0 = arith.constant 0 : index
    %c0_0 = arith.constant 0 : index
    %0 = vector.load %arg3[%c0, %c0_0] : memref<8x128xf32, #tpu.memory_space<vmem>>, vector<8x128xf32>
    %c0_1 = arith.constant 0 : index
    %c0_2 = arith.constant 0 : index
    %1 = vector.load %arg2[%c0_1, %c0_2] : memref<1x128xf32, #tpu.memory_space<vmem>>, vector<1x128xf32>
    %2 = vector.broadcast %1 : vector<1x128xf32> to vector<8x128xf32>
    %3 = arith.mulf %0, %2 : vector<8x128xf32>
    %c0_3 = arith.constant 0 : index
    %c0_4 = arith.constant 0 : index
    %4 = vector.load %arg4[%c0_3, %c0_4] : memref<8x128xf32, #tpu.memory_space<vmem>>, vector<8x128xf32>
    tpu.vector_store %arg4[%c0_3, %c0_4], %3 {strides = array<i32>} : memref<8x128xf32, #tpu.memory_space<vmem>>, vector<8x128xf32>,
    return
  }
  func.func @transform_0(%arg0: i32, %arg1: i32) -> (i32, i32) {
    %c0_i32 = arith.constant 0 : i32
    %c0_i32_0 = arith.constant 0 : i32
    return %c0_i32, %arg1 : i32, i32
  }
  func.func @transform_1(%arg0: i32, %arg1: i32) -> (i32, i32) {
    %c0_i32 = arith.constant 0 : i32
    return %arg0, %arg1 : i32, i32
  }
  func.func @transform_2(%arg0: i32, %arg1: i32) -> (i32, i32) {
    %c0_i32 = arith.constant 0 : i32
    return %arg0, %arg1 : i32, i32
  }
}

</mosaic_0001>

<llo_original>
// kernel: tpu_custom_call.1
$region0: #{tpu_custom_call.1}
  #allocation0 [shape = 'u32[]', space=smem, size = 0x4, offset = 0x4, fixed_abs, tag = 'smem constant byte address 0x4 - core index']
  #allocation1 [shape = 'u32[144,128]{1,0:T(1,128)}', space=vmem, size = 0x12000, scoped, tag = 'internal scratch']
  %s0 = inlined_call_operand.hbm [shape: f32[1,128], index: 0, kind: input, shape index: {}]
  %s1 = inlined_call_operand.hbm [shape: f32[8,128], index: 1, kind: input, shape index: {}]
  %s2 = inlined_call_operand.hbm [shape: f32[8,128], index: 2, kind: output, shape index: {}]
  %s3 = sld [smem:[#allocation0]]
  $region26: #{tpu_custom_call.1} parent=0
    _
  %s5 = ssub.s32 1, %s3
  %s6 = scalar_select 0, %s5, %s3
  $region1: #{tpu_custom_call.1} parent=0
    #allocation2 [shape = 'u8[512]{0}', space=vmem, size = 0x400, scoped, tag = 'input window, operand 0, single buffered']
    #allocation3 [shape = 's32[1]{0}', space=sflag, size = 0x4, scoped, tag = 'scoped memory for tpu_custom_call.1']
    #allocation4 [shape = 's32[1]{0}', space=sflag, size = 0x4, scoped, tag = 'scoped memory for tpu_custom_call.1']
    #allocation5 [shape = 'u8[4096]{0}', space=vmem, size = 0x1000, scoped, tag = 'input window, operand 1, single buffered']
    #allocation6 [shape = 's32[1]{0}', space=sflag, size = 0x4, scoped, tag = 'scoped memory for tpu_custom_call.1']
    #allocation7 [shape = 'u8[4096]{0}', space=vmem, size = 0x1000, scoped, tag = 'output window, operand 0, single buffered']
    %7 = vsyncpa [#allocation3], 0
    %8 = vsyncpa [#allocation6], 0
    %9 = vsyncpa [#allocation4], 0
    // Predicated region
    $region2: #{tpu_custom_call.1} parent=1 // pred_check
      _
    $region3: #{tpu_custom_call.1} parent=1 // pred_check_branch
      %11 = sbr.rel (0) target = $region5
    $region4: #{tpu_custom_call.1} parent=1 // pred_region
      %s13 = ssub.s32 16, 16
      %14 = vsyncadd [#allocation3], %s13
      %s16 = sshll.u32 [#allocation2], 4
      %s17 = int_to_ptr.vmem [resolvable:$true] %s16
      %19 = dma.hbm_to_vmem [thread:$0]  %s0, 16, %s17, [#allocation3]
    $region5: #{tpu_custom_call.1} parent=1 // pred_fallthru
      _
    // Predicated region
    $region6: #{tpu_custom_call.1} parent=1 // pred_check
      _
    $region7: #{tpu_custom_call.1} parent=1 // pred_check_branch
      %21 = sbr.rel (0) target = $region9
    $region8: #{tpu_custom_call.1} parent=1 // pred_region
      %s23 = ssub.s32 128, 128
      %24 = vsyncadd [#allocation6], %s23
      %s26 = sshll.u32 [#allocation5], 4
      %s27 = int_to_ptr.vmem [resolvable:$true] %s26
      %29 = dma.hbm_to_vmem [thread:$0]  %s1, 128, %s27, [#allocation6]
    $region9: #{tpu_custom_call.1} parent=1 // pred_fallthru
      _
    // Predicated region
    $region10: #{tpu_custom_call.1} parent=1 // pred_check
      _
    $region11: #{tpu_custom_call.1} parent=1 // pred_check_branch
      %31 = sbr.rel (0) target = $region13
    $region12: #{tpu_custom_call.1} parent=1 // pred_region
      %32 = dma.done [#allocation3], 16
    $region13: #{tpu_custom_call.1} parent=1 // pred_fallthru
      _
    // Predicated region
    $region14: #{tpu_custom_call.1} parent=1 // pred_check
      _
    $region15: #{tpu_custom_call.1} parent=1 // pred_check_branch
      %34 = sbr.rel (0) target = $region17
    $region16: #{tpu_custom_call.1} parent=1 // pred_region
      %35 = dma.done [#allocation6], 128
    $region17: #{tpu_custom_call.1} parent=1 // pred_fallthru
      _
    %v36 = vld [vmem:[#allocation5] sm:$0xff]
    %v37 = vld [vmem:[#allocation2] sm:$0x1]
    %v39 = vlaneseq
    %v40 = vshrl.u32 %v39, 7
    %v41 = vsub.s32 0, %v40
    %v42 = vrot.slane %v37, %v41
    %v44 = vmul.f32 %v36, %v42
    %45 = vst [vmem:[#allocation7] sm:$0xff] %v44
    // Predicated region
    $region18: #{tpu_custom_call.1} parent=1 // pred_check
      _
    $region19: #{tpu_custom_call.1} parent=1 // pred_check_branch
      %47 = sbr.rel (0) target = $region21
    $region20: #{tpu_custom_call.1} parent=1 // pred_region
      %s49 = ssub.s32 128, 128
      %50 = vsyncadd [#allocation4], %s49
      %s52 = sshll.u32 [#allocation7], 4
      %s53 = int_to_ptr.vmem [resolvable:$true] %s52
      %55 = dma.vmem_to_hbm [thread:$0]  %s53, 128, %s2, [#allocation4]
    $region21: #{tpu_custom_call.1} parent=1 // pred_fallthru
      _
    // Predicated region
    $region22: #{tpu_custom_call.1} parent=1 // pred_check
      _
    $region23: #{tpu_custom_call.1} parent=1 // pred_check_branch
      %57 = sbr.rel (0) target = $region25
    $region24: #{tpu_custom_call.1} parent=1 // pred_region
      %58 = dma.done [#allocation4], 128
    $region25: #{tpu_custom_call.1} parent=1 // pred_fallthru
      _
    %59 = vsyncpa [#allocation3], 1
    %60 = vsyncpa [#allocation6], 1
    %61 = vsyncpa [#allocation4], 1

</llo_original>
